<compile_context>
chip_gen: v5e
topology: v5e:2x2
jax: 0.10.0
libtpu: 0.0.40
codegen_flags: <defaults>
</compile_context>

<pallas_src>
import functools
import math

import jax
import jax.numpy as jnp
from jax.experimental import pallas as pl
from jax.experimental.pallas import tpu as pltpu


def _round_up(v, m):
    return (v + m - 1) // m * m


def plan_tiling(n, block_n=512, block_k=512):
    """Pick (block_n, block_k, n_pad): power-of-two x 128 tiles, bounded over-padding of A."""
    n_pad128 = _round_up(max(n, 1), 128)

    def pick(req):
        b = 128
        while (b * 2 <= req and b * 2 <= n_pad128
               and _round_up(n, b * 2) - n_pad128 <= max(n // 8, 0)):
            b *= 2
        return b

    bn, bk = pick(block_n), pick(block_k)
    # keep >= 2 row tiles when possible so the "parallel" axis shards across v7x's 2 TCs
    while bn > 128 and _round_up(n, bn) // bn < 2:
        bn //= 2
    n_pad = _round_up(n, max(bn, bk))   # both powers-of-two x 128 -> lcm == max
    return bn, bk, n_pad


def _gnn_layer_kernel(
    a_f_ref,    # (TN, TK)   forward normalized adjacency block   A[dst, src]   (bf16)
    a_r_ref,    # (TN, TK)   reverse normalized adjacency block                 (bf16)
    x_src_ref,  # (TK, Hp)   source-node features (aggregation operand)         (bf16)
    x_dst_ref,  # (TN, Hp)   destination-node features (self term + skip)       (bf16)
    ws_f_ref,   # (Hp, Hp)   W_self_fwd^T   (bf16)
    wn_f_ref,   # (Hp, Hp)   W_neigh_fwd^T  (bf16)
    ws_r_ref,   # (Hp, Hp)   W_self_rev^T   (bf16)
    wn_r_ref,   # (Hp, Hp)   W_neigh_rev^T  (bf16)
    b_f_ref,    # (1, Hp)    f32 bias fwd
    b_r_ref,    # (1, Hp)    f32 bias rev
    o_ref,      # (TN, Hp)   output (caller dtype)
    hf_acc,     # scratch (TN, Hp) f32 — forward neighbor aggregate
    hr_acc,     # scratch (TN, Hp) f32 — reverse neighbor aggregate
):
    k = pl.program_id(1)

    @pl.when(k == 0)
    def _():
        hf_acc[...] = jnp.zeros_like(hf_acc)
        hr_acc[...] = jnp.zeros_like(hr_acc)

    # ---- mean aggregation (A @ x), accumulated over source-node tiles on the MXU ----
    x_src = x_src_ref[...]
    hf_acc[...] += jnp.dot(a_f_ref[...], x_src, preferred_element_type=jnp.float32)
    hr_acc[...] += jnp.dot(a_r_ref[...], x_src, preferred_element_type=jnp.float32)

    @pl.when(k == pl.num_programs(1) - 1)
    def _():
        x_blk = x_dst_ref[...]
        hf = hf_acc[...].astype(x_blk.dtype)
        hr = hr_acc[...].astype(x_blk.dtype)
        # SAGE linear per direction: x @ W_self^T + h_neigh @ W_neigh^T + b   (no concat)
        y_f = (jnp.dot(x_blk, ws_f_ref[...], preferred_element_type=jnp.float32)
               + jnp.dot(hf, wn_f_ref[...], preferred_element_type=jnp.float32)
               + b_f_ref[...])
        y_r = (jnp.dot(x_blk, ws_r_ref[...], preferred_element_type=jnp.float32)
               + jnp.dot(hr, wn_r_ref[...], preferred_element_type=jnp.float32)
               + b_r_ref[...])
        out = x_blk.astype(jnp.float32) + jnp.maximum(y_f, 0.0) + jnp.maximum(y_r, 0.0)
        o_ref[...] = out.astype(o_ref.dtype)


@functools.partial(jax.jit, static_argnames=("block_n", "block_k"))
def gnn_layer(a_fwd, a_rev, x, ws_f, wn_f, b_f, ws_r, wn_r, b_r,
              *, block_n=512, block_k=512):
    n, h = x.shape
    out_dtype = x.dtype
    act_dtype = jnp.bfloat16

    block_n, block_k, n_pad = plan_tiling(n, block_n, block_k)
    h_pad = _round_up(max(h, 128), 128)

    def pad_cast(a, shape, dtype):
        a = a.astype(dtype)
        pads = [(0, s - d) for s, d in zip(shape, a.shape)]
        if any(p for _, p in pads):
            a = jnp.pad(a, pads)
        return a

    # Adjacency should arrive already padded + bf16 (see build_norm_adj); only pad/cast here
    # if the caller passed an unpadded / f32 one.
    a_f = pad_cast(a_fwd, (n_pad, n_pad), act_dtype)
    a_r = pad_cast(a_rev, (n_pad, n_pad), act_dtype)
    x_p = pad_cast(x, (n_pad, h_pad), act_dtype)

    def prep_w(w):  # torch [out, in] -> pre-transposed, padded, bf16 [in_pad, out_pad]
        return pad_cast(w.T, (h_pad, h_pad), act_dtype)

    ws_f_t, wn_f_t = prep_w(ws_f), prep_w(wn_f)
    ws_r_t, wn_r_t = prep_w(ws_r), prep_w(wn_r)
    bf = pad_cast(b_f.reshape(1, h), (1, h_pad), jnp.float32)
    br = pad_cast(b_r.reshape(1, h), (1, h_pad), jnp.float32)

    # --- VMEM budget (double-buffered inputs + f32 accumulators); clamp <= ~56 MiB for v7x ---
    out_bpe = jnp.dtype(out_dtype).itemsize
    vmem = (2 * 2 * block_n * block_k * 2           # A_fwd / A_rev tiles (bf16, 2 bufs each)
            + 2 * (block_k + block_n) * h_pad * 2   # x src / dst tiles
            + 2 * 4 * h_pad * h_pad * 2             # 4 weight matrices
            + 2 * 2 * h_pad * 4                     # biases
            + 2 * block_n * h_pad * out_bpe         # output tile
            + 2 * block_n * h_pad * 4)              # two f32 accumulators
    vmem_limit = min(max(int(vmem * 1.5) + (4 << 20), 32 << 20), 56 << 20)

    grid = (n_pad // block_n, n_pad // block_k)
    adj_map = lambda i, k: (i, k)
    src_map = lambda i, k: (k, 0)
    dst_map = lambda i, k: (i, 0)
    full = lambda i, k: (0, 0)

    # TODO(synk): when n_pad*h_pad (bf16) comfortably fits VMEM, pass x once full-resident
    # (constant index map) and slice the K chunk in-kernel with pl.ds to kill the per-row-tile
    # re-read of x_src; for sparse graphs (E << N^2) replace the dense A @ x with a CSR
    # scalar-prefetch gather/segment-sum (PrefetchScalarGridSpec row offsets).
    out = pl.pallas_call(
        _gnn_layer_kernel,
        out_shape=jax.ShapeDtypeStruct((n_pad, h_pad), out_dtype),
        grid_spec=pltpu.PrefetchScalarGridSpec(
            num_scalar_prefetch=0,
            grid=grid,
            in_specs=[
                pl.BlockSpec((block_n, block_k), adj_map),   # A_fwd block
                pl.BlockSpec((block_n, block_k), adj_map),   # A_rev block
                pl.BlockSpec((block_k, h_pad), src_map),     # x source tile
                pl.BlockSpec((block_n, h_pad), dst_map),     # x dest tile (self/skip)
                pl.BlockSpec((h_pad, h_pad), full),          # W_self_fwd^T
                pl.BlockSpec((h_pad, h_pad), full),          # W_neigh_fwd^T
                pl.BlockSpec((h_pad, h_pad), full),          # W_self_rev^T
                pl.BlockSpec((h_pad, h_pad), full),          # W_neigh_rev^T
                pl.BlockSpec((1, h_pad), full),              # bias fwd
                pl.BlockSpec((1, h_pad), full),              # bias rev
            ],
            out_specs=pl.BlockSpec((block_n, h_pad), dst_map),
            scratch_shapes=[
                pltpu.VMEM((block_n, h_pad), jnp.float32),
                pltpu.VMEM((block_n, h_pad), jnp.float32),
            ],
        ),
        compiler_params=pltpu.CompilerParams(
            dimension_semantics=("parallel", "arbitrary"),
            vmem_limit_bytes=vmem_limit,
        ),
    )(a_f, a_r, x_p, x_p, ws_f_t, wn_f_t, ws_r_t, wn_r_t, bf, br)

    return out[:n, :h]


def build_norm_adj(src, dst, weights, num_nodes, padded_nodes=None, dtype=jnp.bfloat16):
    """Dense normalized adjacency A[dst, src] = sum(w_e) / in_degree(dst) (DGL mean aggregator).

    Built directly at `padded_nodes` size and in the kernel's activation dtype so the wrapper
    does not need an extra pad/cast pass over the O(N^2) array.
    """
    if padded_nodes is None:
        padded_nodes = num_nodes
    adj = jnp.zeros((padded_nodes, padded_nodes), jnp.float32).at[dst, src].add(weights)
    deg = jnp.zeros((padded_nodes,), jnp.float32).at[dst].add(1.0)
    return (adj / jnp.maximum(deg, 1.0)[:, None]).astype(dtype)


def reference_jax(a_fwd, a_rev, x, ws_f, wn_f, b_f, ws_r, wn_r, b_r):
    y = jax.nn.relu(x @ ws_f.T + (a_fwd @ x) @ wn_f.T + b_f)
    y = y + jax.nn.relu(x @ ws_r.T + (a_rev @ x) @ wn_r.T + b_r)
    return x + y


if __name__ == "__main__":
    key = jax.random.PRNGKey(0)
    N, H, E = 16, 32, 48  # nodes, hidden_dim, edges

    ks = jax.random.split(key, 9)
    x = jax.random.normal(ks[0], (N, H), jnp.float32)

    # Deterministic synthetic graph with edge weights (graph.edata['weights']).
    src = jax.random.randint(ks[1], (E,), 0, N)
    dst = jax.random.randint(ks[2], (E,), 0, N)
    ew = jax.random.uniform(ks[3], (E,), jnp.float32, 0.1, 1.0)

    _, _, n_pad = plan_tiling(N)
    a_fwd = build_norm_adj(src, dst, ew, N, padded_nodes=n_pad)   # original graph (bf16, padded)
    a_rev = build_norm_adj(dst, src, ew, N, padded_nodes=n_pad)   # dgl.reverse(graph, copy_edata=True)

    # SAGEConv parameters (fc_self, fc_neigh: [out, in]; bias: [out]) — deterministic init.
    scale = 0.1
    ws_f = scale * jax.random.normal(ks[4], (H, H), jnp.float32)
    wn_f = scale * jax.random.normal(ks[5], (H, H), jnp.float32)
    b_f = jnp.zeros((1, H), jnp.float32)
    ws_r = scale * jax.random.normal(ks[6], (H, H), jnp.float32)
    wn_r = scale * jax.random.normal(ks[7], (H, H), jnp.float32)
    b_r = 0.01 * jax.random.normal(ks[8], (1, H), jnp.float32)

    out = gnn_layer(a_fwd, a_rev, x, ws_f, wn_f, b_f, ws_r, wn_r, b_r)
    jax.block_until_ready(out)

    # Exact f32 reference (kernel runs bf16 activations/adjacency -> looser tolerance).
    a_fwd_f32 = build_norm_adj(src, dst, ew, N, dtype=jnp.float32)
    a_rev_f32 = build_norm_adj(dst, src, ew, N, dtype=jnp.float32)
    ref = reference_jax(a_fwd_f32, a_rev_f32, x, ws_f, wn_f, b_f, ws_r, wn_r, b_r)
    assert out.shape == (N, H)
    assert jnp.allclose(out, ref, atol=5e-2, rtol=5e-2), "mismatch vs JAX reference"

    print("KERNEL_OK")
</pallas_src>

<mosaic_0001>
module attributes {stable_mosaic.version = 11 : i64} {
  func.func @_gnn_layer_kernel(%arg0: i32, %arg1: i32, %arg2: memref<128x128xbf16, #tpu.memory_space<vmem>>, %arg3: memref<128x128xbf16, #tpu.memory_space<vmem>>, %arg4: memref<128x128xbf16, #tpu.memory_space<vmem>>, %arg5: memref<128x128xbf16, #tpu.memory_space<vmem>>, %arg6: memref<128x128xbf16, #tpu.memory_space<vmem>>, %arg7: memref<128x128xbf16, #tpu.memory_space<vmem>>, %arg8: memref<128x128xbf16, #tpu.memory_space<vmem>>, %arg9: memref<128x128xbf16, #tpu.memory_space<vmem>>, %arg10: memref<1x128xf32, #tpu.memory_space<vmem>>, %arg11: memref<1x128xf32, #tpu.memory_space<vmem>>, %arg12: memref<128x128xf32, #tpu.memory_space<vmem>>, %arg13: memref<128x128xf32, #tpu.memory_space<vmem>>, %arg14: memref<128x128xf32, #tpu.memory_space<vmem>>) attributes {dimension_semantics = [#tpu.dimension_semantics<parallel>, #tpu.dimension_semantics<arbitrary>], iteration_bounds = array<i64: 1, 1>, scalar_prefetch = 0 : i64, scratch_operands = 2 : i64, tpu.core_type = #tpu.core_type<tc>, window_params = [{transform_indices = @transform_0, window_bounds = array<i64: 128, 128>}, {transform_indices = @transform_1, window_bounds = array<i64: 128, 128>}, {transform_indices = @transform_2, window_bounds = array<i64: 128, 128>}, {transform_indices = @transform_3, window_bounds = array<i64: 128, 128>}, {pipeline_mode = #tpu.pipeline_mode<synchronous>, transform_indices = @transform_4, window_bounds = array<i64: 128, 128>}, {pipeline_mode = #tpu.pipeline_mode<synchronous>, transform_indices = @transform_5, window_bounds = array<i64: 128, 128>}, {pipeline_mode = #tpu.pipeline_mode<synchronous>, transform_indices = @transform_6, window_bounds = array<i64: 128, 128>}, {pipeline_mode = #tpu.pipeline_mode<synchronous>, transform_indices = @transform_7, window_bounds = array<i64: 128, 128>}, {pipeline_mode = #tpu.pipeline_mode<synchronous>, transform_indices = @transform_8, window_bounds = array<i64: 1, 128>}, {pipeline_mode = #tpu.pipeline_mode<synchronous>, transform_indices = @transform_9, window_bounds = array<i64: 1, 128>}, {transform_indices = @transform_10, window_bounds = array<i64: 128, 128>}]} {
    %c0_i32 = arith.constant 0 : i32
    %0 = arith.cmpi eq, %arg1, %c0_i32 : i32
    %1 = arith.extui %0 : i1 to i32
    %c0_i32_0 = arith.constant 0 : i32
    %2 = arith.cmpi ne, %1, %c0_i32_0 : i32
    scf.if %2 {
      %cst_17 = arith.constant 0.000000e+00 : f32
      %17 = vector.broadcast %cst_17 : f32 to vector<128x128xf32>
      %c0_18 = arith.constant 0 : index
      %c0_19 = arith.constant 0 : index
      %18 = vector.load %arg13[%c0_18, %c0_19] : memref<128x128xf32, #tpu.memory_space<vmem>>, vector<128x128xf32>
      tpu.vector_store %arg13[%c0_18, %c0_19], %17 {strides = array<i32>} : memref<128x128xf32, #tpu.memory_space<vmem>>, vector<128x128xf32>,
      %cst_20 = arith.constant 0.000000e+00 : f32
      %19 = vector.broadcast %cst_20 : f32 to vector<128x128xf32>
      %c0_21 = arith.constant 0 : index
      %c0_22 = arith.constant 0 : index
      %20 = vector.load %arg14[%c0_21, %c0_22] : memref<128x128xf32, #tpu.memory_space<vmem>>, vector<128x128xf32>
      tpu.vector_store %arg14[%c0_21, %c0_22], %19 {strides = array<i32>} : memref<128x128xf32, #tpu.memory_space<vmem>>, vector<128x128xf32>,
    } else {
    }
    %c0 = arith.constant 0 : index
    %c0_1 = arith.constant 0 : index
    %3 = vector.load %arg4[%c0, %c0_1] : memref<128x128xbf16, #tpu.memory_space<vmem>>, vector<128x128xbf16>
    %c0_2 = arith.constant 0 : index
    %c0_3 = arith.constant 0 : index
    %4 = vector.load %arg13[%c0_2, %c0_3] : memref<128x128xf32, #tpu.memory_space<vmem>>, vector<128x128xf32>
    %c0_4 = arith.constant 0 : index
    %c0_5 = arith.constant 0 : index
    %5 = vector.load %arg2[%c0_4, %c0_5] : memref<128x128xbf16, #tpu.memory_space<vmem>>, vector<128x128xbf16>
    %cst = arith.constant dense<0.000000e+00> : vector<128x128xf32>
    %6 = tpu.matmul %5, %3, %cst {dimension_numbers = #tpu.dot_dimension_numbers<[1], [0], [0], [1], [0, 0, 1, 1], [], []>} : vector<128x128xbf16>, vector<128x128xbf16>, vector<128x128xf32> -> vector<128x128xf32>
    %7 = arith.addf %4, %6 : vector<128x128xf32>
    %c0_6 = arith.constant 0 : index
    %c0_7 = arith.constant 0 : index
    %8 = vector.load %arg13[%c0_6, %c0_7] : memref<128x128xf32, #tpu.memory_space<vmem>>, vector<128x128xf32>
    tpu.vector_store %arg13[%c0_6, %c0_7], %7 {strides = array<i32>} : memref<128x128xf32, #tpu.memory_space<vmem>>, vector<128x128xf32>,
    %c0_8 = arith.constant 0 : index
    %c0_9 = arith.constant 0 : index
    %9 = vector.load %arg14[%c0_8, %c0_9] : memref<128x128xf32, #tpu.memory_space<vmem>>, vector<128x128xf32>
    %c0_10 = arith.constant 0 : index
    %c0_11 = arith.constant 0 : index
    %10 = vector.load %arg3[%c0_10, %c0_11] : memref<128x128xbf16, #tpu.memory_space<vmem>>, vector<128x128xbf16>
    %cst_12 = arith.constant dense<0.000000e+00> : vector<128x128xf32>
    %11 = tpu.matmul %10, %3, %cst_12 {dimension_numbers = #tpu.dot_dimension_numbers<[1], [0], [0], [1], [0, 0, 1, 1], [], []>} : vector<128x128xbf16>, vector<128x128xbf16>, vector<128x128xf32> -> vector<128x128xf32>
    %12 = arith.addf %9, %11 : vector<128x128xf32>
    %c0_13 = arith.constant 0 : index
    %c0_14 = arith.constant 0 : index
    %13 = vector.load %arg14[%c0_13, %c0_14] : memref<128x128xf32, #tpu.memory_space<vmem>>, vector<128x128xf32>
    tpu.vector_store %arg14[%c0_13, %c0_14], %12 {strides = array<i32>} : memref<128x128xf32, #tpu.memory_space<vmem>>, vector<128x128xf32>,
    %c0_i32_15 = arith.constant 0 : i32
    %14 = arith.cmpi eq, %arg1, %c0_i32_15 : i32
    %15 = arith.extui %14 : i1 to i32
    %c0_i32_16 = arith.constant 0 : i32
    %16 = arith.cmpi ne, %15, %c0_i32_16 : i32
    scf.if %16 {
      %c0_17 = arith.constant 0 : index
      %c0_18 = arith.constant 0 : index
      %17 = vector.load %arg5[%c0_17, %c0_18] : memref<128x128xbf16, #tpu.memory_space<vmem>>, vector<128x128xbf16>
      %c0_19 = arith.constant 0 : index
      %c0_20 = arith.constant 0 : index
      %18 = vector.load %arg13[%c0_19, %c0_20] : memref<128x128xf32, #tpu.memory_space<vmem>>, vector<128x128xf32>
      %19 = arith.truncf %18 : vector<128x128xf32> to vector<128x128xbf16>
      %c0_21 = arith.constant 0 : index
      %c0_22 = arith.constant 0 : index
      %20 = vector.load %arg14[%c0_21, %c0_22] : memref<128x128xf32, #tpu.memory_space<vmem>>, vector<128x128xf32>
      %21 = arith.truncf %20 : vector<128x128xf32> to vector<128x128xbf16>
      %c0_23 = arith.constant 0 : index
      %c0_24 = arith.constant 0 : index
      %22 = vector.load %arg6[%c0_23, %c0_24] : memref<128x128xbf16, #tpu.memory_space<vmem>>, vector<128x128xbf16>
      %cst_25 = arith.constant dense<0.000000e+00> : vector<128x128xf32>
      %23 = tpu.matmul %17, %22, %cst_25 {dimension_numbers = #tpu.dot_dimension_numbers<[1], [0], [0], [1], [0, 0, 1, 1], [], []>} : vector<128x128xbf16>, vector<128x128xbf16>, vector<128x128xf32> -> vector<128x128xf32>
      %c0_26 = arith.constant 0 : index
      %c0_27 = arith.constant 0 : index
      %24 = vector.load %arg7[%c0_26, %c0_27] : memref<128x128xbf16, #tpu.memory_space<vmem>>, vector<128x128xbf16>
      %cst_28 = arith.constant dense<0.000000e+00> : vector<128x128xf32>
      %25 = tpu.matmul %19, %24, %cst_28 {dimension_numbers = #tpu.dot_dimension_numbers<[1], [0], [0], [1], [0, 0, 1, 1], [], []>} : vector<128x128xbf16>, vector<128x128xbf16>, vector<128x128xf32> -> vector<128x128xf32>
      %26 = arith.addf %23, %25 : vector<128x128xf32>
      %c0_29 = arith.constant 0 : index
      %c0_30 = arith.constant 0 : index
      %27 = vector.load %arg10[%c0_29, %c0_30] : memref<1x128xf32, #tpu.memory_space<vmem>>, vector<1x128xf32>
      %28 = vector.broadcast %27 : vector<1x128xf32> to vector<128x128xf32>
      %29 = arith.addf %26, %28 : vector<128x128xf32>
      %c0_31 = arith.constant 0 : index
      %c0_32 = arith.constant 0 : index
      %30 = vector.load %arg8[%c0_31, %c0_32] : memref<128x128xbf16, #tpu.memory_space<vmem>>, vector<128x128xbf16>
      %cst_33 = arith.constant dense<0.000000e+00> : vector<128x128xf32>
      %31 = tpu.matmul %17, %30, %cst_33 {dimension_numbers = #tpu.dot_dimension_numbers<[1], [0], [0], [1], [0, 0, 1, 1], [], []>} : vector<128x128xbf16>, vector<128x128xbf16>, vector<128x128xf32> -> vector<128x128xf32>
      %c0_34 = arith.constant 0 : index
      %c0_35 = arith.constant 0 : index
      %32 = vector.load %arg9[%c0_34, %c0_35] : memref<128x128xbf16, #tpu.memory_space<vmem>>, vector<128x128xbf16>
      %cst_36 = arith.constant dense<0.000000e+00> : vector<128x128xf32>
      %33 = tpu.matmul %21, %32, %cst_36 {dimension_numbers = #tpu.dot_dimension_numbers<[1], [0], [0], [1], [0, 0, 1, 1], [], []>} : vector<128x128xbf16>, vector<128x128xbf16>, vector<128x128xf32> -> vector<128x128xf32>
      %34 = arith.addf %31, %33 : vector<128x128xf32>
      %c0_37 = arith.constant 0 : index
      %c0_38 = arith.constant 0 : index
      %35 = vector.load %arg11[%c0_37, %c0_38] : memref<1x128xf32, #tpu.memory_space<vmem>>, vector<1x128xf32>
      %36 = vector.broadcast %35 : vector<1x128xf32> to vector<128x128xf32>
      %37 = arith.addf %34, %36 : vector<128x128xf32>
      %38 = arith.extf %17 : vector<128x128xbf16> to vector<128x128xf32>
      %cst_39 = arith.constant 0.000000e+00 : f32
      %39 = vector.broadcast %cst_39 : f32 to vector<128x128xf32>
      %40 = arith.maximumf %29, %39 : vector<128x128xf32>
      %41 = arith.addf %38, %40 : vector<128x128xf32>
      %cst_40 = arith.constant 0.000000e+00 : f32
      %42 = vector.broadcast %cst_40 : f32 to vector<128x128xf32>
      %43 = arith.maximumf %37, %42 : vector<128x128xf32>
      %44 = arith.addf %41, %43 : vector<128x128xf32>
      %c0_41 = arith.constant 0 : index
      %c0_42 = arith.constant 0 : index
      %45 = vector.load %arg12[%c0_41, %c0_42] : memref<128x128xf32, #tpu.memory_space<vmem>>, vector<128x128xf32>
      tpu.vector_store %arg12[%c0_41, %c0_42], %44 {strides = array<i32>} : memref<128x128xf32, #tpu.memory_space<vmem>>, vector<128x128xf32>,
    } else {
    }
    return
  }
  func.func @transform_0(%arg0: i32, %arg1: i32) -> (i32, i32) {
    %c0_i32 = arith.constant 0 : i32
    return %arg0, %arg1 : i32, i32
  }
  func.func @transform_1(%arg0: i32, %arg1: i32) -> (i32, i32) {
    %c0_i32 = arith.constant 0 : i32
    return %arg0, %arg1 : i32, i32
  }
  func.func @transform_2(%arg0: i32, %arg1: i32) -> (i32, i32) {
    %c0_i32 = arith.constant 0 : i32
    %c0_i32_0 = arith.constant 0 : i32
    return %arg1, %c0_i32 : i32, i32
  }
  func.func @transform_3(%arg0: i32, %arg1: i32) -> (i32, i32) {
    %c0_i32 = arith.constant 0 : i32
    %c0_i32_0 = arith.constant 0 : i32
    return %arg0, %c0_i32 : i32, i32
  }
  func.func @transform_4(%arg0: i32, %arg1: i32) -> (i32, i32) {
    %c0_i32 = arith.constant 0 : i32
    %c0_i32_0 = arith.constant 0 : i32
    %c0_i32_1 = arith.constant 0 : i32
    return %c0_i32, %c0_i32_0 : i32, i32
  }
  func.func @transform_5(%arg0: i32, %arg1: i32) -> (i32, i32) {
    %c0_i32 = arith.constant 0 : i32
    %c0_i32_0 = arith.constant 0 : i32
    %c0_i32_1 = arith.constant 0 : i32
    return %c0_i32, %c0_i32_0 : i32, i32
  }
  func.func @transform_6(%arg0: i32, %arg1: i32) -> (i32, i32) {
    %c0_i32 = arith.constant 0 : i32
    %c0_i32_0 = arith.constant 0 : i32
    %c0_i32_1 = arith.constant 0 : i32
    return %c0_i32, %c0_i32_0 : i32, i32
  }
  func.func @transform_7(%arg0: i32, %arg1: i32) -> (i32, i32) {
    %c0_i32 = arith.constant 0 : i32
    %c0_i32_0 = arith.constant 0 : i32
    %c0_i32_1 = arith.constant 0 : i32
    return %c0_i32, %c0_i32_0 : i32, i32
  }
  func.func @transform_8(%arg0: i32, %arg1: i32) -> (i32, i32) {
    %c0_i32 = arith.constant 0 : i32
    %c0_i32_0 = arith.constant 0 : i32
    %c0_i32_1 = arith.constant 0 : i32
    return %c0_i32, %c0_i32_0 : i32, i32
  }
  func.func @transform_9(%arg0: i32, %arg1: i32) -> (i32, i32) {
    %c0_i32 = arith.constant 0 : i32
    %c0_i32_0 = arith.constant 0 : i32
    %c0_i32_1 = arith.constant 0 : i32
    return %c0_i32, %c0_i32_0 : i32, i32
  }
  func.func @transform_10(%arg0: i32, %arg1: i32) -> (i32, i32) {
    %c0_i32 = arith.constant 0 : i32
    %c0_i32_0 = arith.constant 0 : i32
    return %arg0, %c0_i32 : i32, i32
  }
}

</mosaic_0001>

<llo_original>
// kernel: gnn_layer.1
$region0: #{gnn_layer.1}
  #allocation0 [shape = 'u32[]', space=smem, size = 0x4, offset = 0x4, fixed_abs, tag = 'smem constant byte address 0x4 - core index']
  #allocation1 [shape = 'u32[72,128]{1,0:T(1,128)}', space=vmem, size = 0x9000, scoped, tag = 'internal scratch']
  #allocation2 [shape = 'f32[128,128]{1,0:T(8,128)}', space=vmem, size = 0x10000, scoped, tag = 'scratch operand']
  #allocation3 [shape = 'f32[128,128]{1,0:T(8,128)}', space=vmem, size = 0x10000, scoped, tag = 'scratch operand']
  %s0 = inlined_call_operand.vmem [shape: bf16[128,128], index: 0, kind: input, shape index: {}]
  %s1 = inlined_call_operand.vmem [shape: bf16[128,128], index: 1, kind: input, shape index: {}]
  %s2 = inlined_call_operand.vmem [shape: bf16[128,128], index: 2, kind: input, shape index: {}, may-alias: {2,3}]
  %s3 = inlined_call_operand.vmem [shape: bf16[128,128], index: 3, kind: input, shape index: {}, may-alias: {2,3}]
  %s4 = inlined_call_operand.vmem [shape: bf16[128,128], index: 4, kind: input, shape index: {}]
  %s5 = inlined_call_operand.vmem [shape: bf16[128,128], index: 5, kind: input, shape index: {}]
  %s6 = inlined_call_operand.vmem [shape: bf16[128,128], index: 6, kind: input, shape index: {}]
  %s7 = inlined_call_operand.vmem [shape: bf16[128,128], index: 7, kind: input, shape index: {}]
  %s8 = inlined_call_operand.vmem [shape: f32[1,128], index: 8, kind: input, shape index: {}]
  %s9 = inlined_call_operand.vmem [shape: f32[1,128], index: 9, kind: input, shape index: {}]
  %s10 = inlined_call_operand.vmem [shape: f32[128,128], index: 10, kind: output, shape index: {}]
  %s11 = sld [smem:[#allocation0]]
  $region58: #{gnn_layer.1} parent=0
    _
  %s13 = ssub.s32 1, %s11
  %s14 = scalar_select 0, %s13, %s11
  // Predicated region
  $region2: #{gnn_layer.1} parent=0 // pred_check
    _
  $region3: #{gnn_layer.1} parent=0 // pred_check_branch
    %16 = sbr.rel (0) target = $region5
  $region4: #{gnn_layer.1} parent=0 // pred_region
    _
  $region5: #{gnn_layer.1} parent=0 // pred_fallthru
    _
  // Predicated region
  $region6: #{gnn_layer.1} parent=0 // pred_check
    _
  $region7: #{gnn_layer.1} parent=0 // pred_check_branch
    %18 = sbr.rel (0) target = $region9
  $region8: #{gnn_layer.1} parent=0 // pred_region
    _
  $region9: #{gnn_layer.1} parent=0 // pred_fallthru
    _
  // Predicated region
  $region10: #{gnn_layer.1} parent=0 // pred_check
    _
  $region11: #{gnn_layer.1} parent=0 // pred_check_branch
    %20 = sbr.rel (0) target = $region13
  $region12: #{gnn_layer.1} parent=0 // pred_region
    _
  $region13: #{gnn_layer.1} parent=0 // pred_fallthru
    _
  // Predicated region
  $region14: #{gnn_layer.1} parent=0 // pred_check
    _
  $region15: #{gnn_layer.1} parent=0 // pred_check_branch
    %22 = sbr.rel (0) target = $region17
  $region16: #{gnn_layer.1} parent=0 // pred_region
    _
  $region17: #{gnn_layer.1} parent=0 // pred_fallthru
    _
  // Predicated region
  $region18: #{gnn_layer.1} parent=0 // pred_check
    _
  $region19: #{gnn_layer.1} parent=0 // pred_check_branch
    %24 = sbr.rel (0) target = $region21
  $region20: #{gnn_layer.1} parent=0 // pred_region
    _
  $region21: #{gnn_layer.1} parent=0 // pred_fallthru
    _
  // Predicated region
  $region22: #{gnn_layer.1} parent=0 // pred_check
    _
  $region23: #{gnn_layer.1} parent=0 // pred_check_branch
    %26 = sbr.rel (0) target = $region25
  $region24: #{gnn_layer.1} parent=0 // pred_region
    _
  $region25: #{gnn_layer.1} parent=0 // pred_fallthru
    _
  // Predicated region
  $region26: #{gnn_layer.1} parent=0 // pred_check
    _
  $region27: #{gnn_layer.1} parent=0 // pred_check_branch
    %28 = sbr.rel (0) target = $region29
  $region28: #{gnn_layer.1} parent=0 // pred_region
    _
  $region29: #{gnn_layer.1} parent=0 // pred_fallthru
    _
  // Predicated region
  $region30: #{gnn_layer.1} parent=0 // pred_check
    _
  $region31: #{gnn_layer.1} parent=0 // pred_check_branch
    %30 = sbr.rel (0) target = $region33
  $region32: #{gnn_layer.1} parent=0 // pred_region
    _
  $region33: #{gnn_layer.1} parent=0 // pred_fallthru
    _
  // Predicated region
  $region34: #{gnn_layer.1} parent=0 // pred_check
    _
  $region35: #{gnn_layer.1} parent=0 // pred_check_branch
    %32 = sbr.rel (0) target = $region37
  $region36: #{gnn_layer.1} parent=0 // pred_region
    _
  $region37: #{gnn_layer.1} parent=0 // pred_fallthru
    _
  // Predicated region
  $region38: #{gnn_layer.1} parent=0 // pred_check
    _
  $region39: #{gnn_layer.1} parent=0 // pred_check_branch
    %34 = sbr.rel (0) target = $region41
  $region40: #{gnn_layer.1} parent=0 // pred_region
    _
  $region41: #{gnn_layer.1} parent=0 // pred_fallthru
    _
  %p35 = scmp.eq.s32.totalorder 0, 0
  // Predicated region
  $region42: #{gnn_layer.1} parent=0 // pred_check
    %p36 = pneg %p35
  $region43: #{gnn_layer.1} parent=0 // pred_check_branch
    %38 = sbr.rel (%p36) target = $region45
  $region44: #{gnn_layer.1} parent=0 // pred_region
    %39 = vst [vmem:[#allocation2] sm:$0xff] 0.0
    %40 = vst [vmem:[#allocation2 + $0x8] sm:$0xff] 0.0
    %41 = vst [vmem:[#allocation2 + $0x10] sm:$0xff] 0.0
    %42 = vst [vmem:[#allocation2 + $0x18] sm:$0xff] 0.0
    %43 = vst [vmem:[#allocation2 + $0x20] sm:$0xff] 0.0
    %44 = vst [vmem:[#allocation2 + $0x28] sm:$0xff] 0.0
    %45 = vst [vmem:[#allocation2 + $0x30] sm:$0xff] 0.0
    %46 = vst [vmem:[#allocation2 + $0x38] sm:$0xff] 0.0
    %47 = vst [vmem:[#allocation2 + $0x40] sm:$0xff] 0.0
    %48 = vst [vmem:[#allocation2 + $0x48] sm:$0xff] 0.0
    %49 = vst [vmem:[#allocation2 + $0x50] sm:$0xff] 0.0
    %50 = vst [vmem:[#allocation2 + $0x58] sm:$0xff] 0.0
    %51 = vst [vmem:[#allocation2 + $0x60] sm:$0xff] 0.0
    %52 = vst [vmem:[#allocation2 + $0x68] sm:$0xff] 0.0
    %53 = vst [vmem:[#allocation2 + $0x70] sm:$0xff] 0.0
    %54 = vst [vmem:[#allocation2 + $0x78] sm:$0xff] 0.0
    %55 = vst [vmem:[#allocation3] sm:$0xff] 0.0
    %56 = vst [vmem:[#allocation3 + $0x8] sm:$0xff] 0.0
    %57 = vst [vmem:[#allocation3 + $0x10] sm:$0xff] 0.0
    %58 = vst [vmem:[#allocation3 + $0x18] sm:$0xff] 0.0
    %59 = vst [vmem:[#allocation3 + $0x20] sm:$0xff] 0.0
    %60 = vst [vmem:[#allocation3 + $0x28] sm:$0xff] 0.0
    %61 = vst [vmem:[#allocation3 + $0x30] sm:$0xff] 0.0
    %62 = vst [vmem:[#allocation3 + $0x38] sm:$0xff] 0.0
    %63 = vst [vmem:[#allocation3 + $0x40] sm:$0xff] 0.0
    %64 = vst [vmem:[#allocation3 + $0x48] sm:$0xff] 0.0
    %65 = vst [vmem:[#allocation3 + $0x50] sm:$0xff] 0.0
    %66 = vst [vmem:[#allocation3 + $0x58] sm:$0xff] 0.0
    %67 = vst [vmem:[#allocation3 + $0x60] sm:$0xff] 0.0
    %68 = vst [vmem:[#allocation3 + $0x68] sm:$0xff] 0.0
    %69 = vst [vmem:[#allocation3 + $0x70] sm:$0xff] 0.0
    %70 = vst [vmem:[#allocation3 + $0x78] sm:$0xff] 0.0
  $region45: #{gnn_layer.1} parent=0 // pred_fallthru
    _
  %v71 = vld [vmem:[%s2] sm:$0xf]
  %v72 = vld [vmem:[%s2 + $0x4] sm:$0xf]
  %v73 = vld [vmem:[%s2 + $0x8] sm:$0xf]
  %v74 = vld [vmem:[%s2 + $0xc] sm:$0xf]
  %v75 = vld [vmem:[%s2 + $0x10] sm:$0xf]
  %v76 = vld [vmem:[%s2 + $0x14] sm:$0xf]
  %v77 = vld [vmem:[%s2 + $0x18] sm:$0xf]
  %v78 = vld [vmem:[%s2 + $0x1c] sm:$0xf]
  %v79 = vld [vmem:[%s2 + $0x20] sm:$0xf]
  %v80 = vld [vmem:[%s2 + $0x24] sm:$0xf]
  %v81 = vld [vmem:[%s2 + $0x28] sm:$0xf]
  %v82 = vld [vmem:[%s2 + $0x2c] sm:$0xf]
  %v83 = vld [vmem:[%s2 + $0x30] sm:$0xf]
  %v84 = vld [vmem:[%s2 + $0x34] sm:$0xf]
  %v85 = vld [vmem:[%s2 + $0x38] sm:$0xf]
  %v86 = vld [vmem:[%s2 + $0x3c] sm:$0xf]
  %v87 = vld [vmem:[#allocation2] sm:$0xff]
  %v88 = vld [vmem:[#allocation2 + $0x8] sm:$0xff]
  %v89 = vld [vmem:[#allocation2 + $0x10] sm:$0xff]
  %v90 = vld [vmem:[#allocation2 + $0x18] sm:$0xff]
  %v91 = vld [vmem:[#allocation2 + $0x20] sm:$0xff]
  %v92 = vld [vmem:[#allocation2 + $0x28] sm:$0xff]
  %v93 = vld [vmem:[#allocation2 + $0x30] sm:$0xff]
  %v94 = vld [vmem:[#allocation2 + $0x38] sm:$0xff]
  %v95 = vld [vmem:[#allocation2 + $0x40] sm:$0xff]
  %v96 = vld [vmem:[#allocation2 + $0x48] sm:$0xff]
  %v97 = vld [vmem:[#allocation2 + $0x50] sm:$0xff]
  %v98 = vld [vmem:[#allocation2 + $0x58] sm:$0xff]
  %v99 = vld [vmem:[#allocation2 + $0x60] sm:$0xff]
  %v100 = vld [vmem:[#allocation2 + $0x68] sm:$0xff]
  %v101 = vld [vmem:[#allocation2 + $0x70] sm:$0xff]
  %v102 = vld [vmem:[#allocation2 + $0x78] sm:$0xff]
  %v103 = vld [vmem:[%s0] sm:$0xf]
  %v104 = vld [vmem:[%s0 + $0x4] sm:$0xf]
  %v105 = vld [vmem:[%s0 + $0x8] sm:$0xf]
  %v106 = vld [vmem:[%s0 + $0xc] sm:$0xf]
  %v107 = vld [vmem:[%s0 + $0x10] sm:$0xf]
  %v108 = vld [vmem:[%s0 + $0x14] sm:$0xf]
  %v109 = vld [vmem:[%s0 + $0x18] sm:$0xf]
  %v110 = vld [vmem:[%s0 + $0x1c] sm:$0xf]
  %v111 = vld [vmem:[%s0 + $0x20] sm:$0xf]
  %v112 = vld [vmem:[%s0 + $0x24] sm:$0xf]
  %v113 = vld [vmem:[%s0 + $0x28] sm:$0xf]
  %v114 = vld [vmem:[%s0 + $0x2c] sm:$0xf]
  %v115 = vld [vmem:[%s0 + $0x30] sm:$0xf]
  %v116 = vld [vmem:[%s0 + $0x34] sm:$0xf]
  %v117 = vld [vmem:[%s0 + $0x38] sm:$0xf]
  %v118 = vld [vmem:[%s0 + $0x3c] sm:$0xf]
  %v135 = vunpack.c.l.b16 %v103
  %v136 = vunpack.c.l.b16 %v104
  %v137 = vunpack.c.l.b16 %v105
  %v138 = vunpack.c.l.b16 %v106
  %v139 = vunpack.c.l.b16 %v107
  %v140 = vunpack.c.l.b16 %v108
  %v141 = vunpack.c.l.b16 %v109
  %v142 = vunpack.c.l.b16 %v110
  %v143 = vunpack.c.l.b16 %v111
  %v144 = vunpack.c.l.b16 %v112
  %v145 = vunpack.c.l.b16 %v113
  %v146 = vunpack.c.l.b16 %v114
  %v147 = vunpack.c.l.b16 %v115
  %v148 = vunpack.c.l.b16 %v116
  %v149 = vunpack.c.l.b16 %v117
  %v150 = vunpack.c.l.b16 %v118
  %v151 = vpack.c.b16 %v136, %v135
  %v152 = vpack.c.b16 %v138, %v137
  %v153 = vpack.c.b16 %v140, %v139
  %v154 = vpack.c.b16 %v142, %v141
  %v155 = vpack.c.b16 %v144, %v143
  %v156 = vpack.c.b16 %v146, %v145
  %v157 = vpack.c.b16 %v148, %v147
  %v158 = vpack.c.b16 %v150, %v149
  %v183 = vunpack.c.l.b16 %v71
  %v184 = vunpack.c.l.b16 %v72
  %v185 = vunpack.c.l.b16 %v73
  %v186 = vunpack.c.l.b16 %v74
  %v187 = vunpack.c.l.b16 %v75
  %v188 = vunpack.c.l.b16 %v76
  %v189 = vunpack.c.l.b16 %v77
  %v190 = vunpack.c.l.b16 %v78
  %v191 = vunpack.c.l.b16 %v79
  %v192 = vunpack.c.l.b16 %v80
  %v193 = vunpack.c.l.b16 %v81
  %v194 = vunpack.c.l.b16 %v82
  %v195 = vunpack.c.l.b16 %v83
  %v196 = vunpack.c.l.b16 %v84
  %v197 = vunpack.c.l.b16 %v85
  %v198 = vunpack.c.l.b16 %v86
  %v199 = vpack.c.b16 %v184, %v183
  %v200 = vpack.c.b16 %v186, %v185
  %v201 = vpack.c.b16 %v188, %v187
  %v202 = vpack.c.b16 %v190, %v189
  %v203 = vpack.c.b16 %v192, %v191
  %v204 = vpack.c.b16 %v194, %v193
  %v205 = vpack.c.b16 %v196, %v195
  %v206 = vpack.c.b16 %v198, %v197
  %215 = vmatpush.bf16.msra.mxu0 %v206
  %216 = vmatpush.bf16.msra.mxu0 %v205
  %217 = vmatpush.bf16.msra.mxu0 %v204
  %218 = vmatpush.bf16.msra.mxu0 %v203
  %219 = vmatpush.bf16.msra.mxu0 %v202
  %220 = vmatpush.bf16.msra.mxu0 %v201
  %221 = vmatpush.bf16.msra.mxu0 %v200
  %222 = vmatpush.bf16.msra.mxu0 %v199
  %223 = vmatmul.bf16.gmra.mxu0 %v151
  %v224 = vpop.f32.mrf.mxu0
  %v225 = vadd.f32 0.0, %v224
  %v226 = vpop.f32.mrf.mxu0
  %v227 = vadd.f32 0.0, %v226
  %228 = vmatmul.bf16.gmra.mxu0 %v152
  %v229 = vpop.f32.mrf.mxu0
  %v230 = vadd.f32 0.0, %v229
  %v231 = vpop.f32.mrf.mxu0
  %v232 = vadd.f32 0.0, %v231
  %233 = vmatmul.bf16.gmra.mxu0 %v153
  %v234 = vpop.f32.mrf.mxu0
  %v235 = vadd.f32 0.0, %v234
  %v236 = vpop.f32.mrf.mxu0
  %v237 = vadd.f32 0.0, %v236
  %238 = vmatmul.bf16.gmra.mxu0 %v154
  %v239 = vpop.f32.mrf.mxu0
  %v240 = vadd.f32 0.0, %v239
  %v241 = vpop.f32.mrf.mxu0
  %v242 = vadd.f32 0.0, %v241
  %243 = vmatmul.bf16.gmra.mxu0 %v155
  %v244 = vpop.f32.mrf.mxu0
  %v245 = vadd.f32 0.0, %v244
  %v246 = vpop.f32.mrf.mxu0
  %v247 = vadd.f32 0.0, %v246
  %248 = vmatmul.bf16.gmra.mxu0 %v156
  %v249 = vpop.f32.mrf.mxu0
  %v250 = vadd.f32 0.0, %v249
  %v251 = vpop.f32.mrf.mxu0
  %v252 = vadd.f32 0.0, %v251
  %253 = vmatmul.bf16.gmra.mxu0 %v157
  %v254 = vpop.f32.mrf.mxu0
  %v255 = vadd.f32 0.0, %v254
  %v256 = vpop.f32.mrf.mxu0
  %v257 = vadd.f32 0.0, %v256
  %258 = vmatmul.bf16.gmra.mxu0 %v158
  %v259 = vpop.f32.mrf.mxu0
  %v260 = vadd.f32 0.0, %v259
  %v261 = vpop.f32.mrf.mxu0
  %v262 = vadd.f32 0.0, %v261
  %263 = vdwg.mxu0
  %v264 = vadd.f32 %v87, %v225
  %v265 = vadd.f32 %v88, %v227
  %v266 = vadd.f32 %v89, %v230
  %v267 = vadd.f32 %v90, %v232
  %v268 = vadd.f32 %v91, %v235
  %v269 = vadd.f32 %v92, %v237
  %v270 = vadd.f32 %v93, %v240
  %v271 = vadd.f32 %v94, %v242
  %v272 = vadd.f32 %v95, %v245
  %v273 = vadd.f32 %v96, %v247
  %v274 = vadd.f32 %v97, %v250
  %v275 = vadd.f32 %v98, %v252
  %v276 = vadd.f32 %v99, %v255
  %v277 = vadd.f32 %v100, %v257
  %v278 = vadd.f32 %v101, %v260
  %v279 = vadd.f32 %v102, %v262
  %280 = vst [vmem:[#allocation2] sm:$0xff] %v264
  %281 = vst [vmem:[#allocation2 + $0x8] sm:$0xff] %v265
  %282 = vst [vmem:[#allocation2 + $0x10] sm:$0xff] %v266
  %283 = vst [vmem:[#allocation2 + $0x18] sm:$0xff] %v267
  %284 = vst [vmem:[#allocation2 + $0x20] sm:$0xff] %v268
  %285 = vst [vmem:[#allocation2 + $0x28] sm:$0xff] %v269
  %286 = vst [vmem:[#allocation2 + $0x30] sm:$0xff] %v270
  %287 = vst [vmem:[#allocation2 + $0x38] sm:$0xff] %v271
  %288 = vst [vmem:[#allocation2 + $0x40] sm:$0xff] %v272
  %289 = vst [vmem:[#allocation2 + $0x48] sm:$0xff] %v273
  %290 = vst [vmem:[#allocation2 + $0x50] sm:$0xff] %v274
  %291 = vst [vmem:[#allocation2 + $0x58] sm:$0xff] %v275
  %292 = vst [vmem:[#allocation2 + $0x60] sm:$0xff] %v276
  %293 = vst [vmem:[#allocation2 + $0x68] sm:$0xff] %v277
  %294 = vst [vmem:[#allocation2 + $0x70] sm:$0xff] %v278
  %295 = vst [vmem:[#allocation2 + $0x78] sm:$0xff] %v279
  %v296 = vld [vmem:[#allocation3] sm:$0xff]
  %v297 = vld [vmem:[#allocation3 + $0x8] sm:$0xff]
  %v298 = vld [vmem:[#allocation3 + $0x10] sm:$0xff]
  %v299 = vld [vmem:[#allocation3 + $0x18] sm:$0xff]
  %v300 = vld [vmem:[#allocation3 + $0x20] sm:$0xff]
  %v301 = vld [vmem:[#allocation3 + $0x28] sm:$0xff]
  %v302 = vld [vmem:[#allocation3 + $0x30] sm:$0xff]
  %v303 = vld [vmem:[#allocation3 + $0x38] sm:$0xff]
  %v304 = vld [vmem:[#allocation3 + $0x40] sm:$0xff]
  %v305 = vld [vmem:[#allocation3 + $0x48] sm:$0xff]
  %v306 = vld [vmem:[#allocation3 + $0x50] sm:$0xff]
  %v307 = vld [vmem:[#allocation3 + $0x58] sm:$0xff]
  %v308 = vld [vmem:[#allocation3 + $0x60] sm:$0xff]
  %v309 = vld [vmem:[#allocation3 + $0x68] sm:$0xff]
  %v310 = vld [vmem:[#allocation3 + $0x70] sm:$0xff]
  %v311 = vld [vmem:[#allocation3 + $0x78] sm:$0xff]
  %v312 = vld [vmem:[%s1] sm:$0xf]
  %v313 = vld [vmem:[%s1 + $0x4] sm:$0xf]
  %v314 = vld [vmem:[%s1 + $0x8] sm:$0xf]
  %v315 = vld [vmem:[%s1 + $0xc] sm:$0xf]
  %v316 = vld [vmem:[%s1 + $0x10] sm:$0xf]
  %v317 = vld [vmem:[%s1 + $0x14] sm:$0xf]
  %v318 = vld [vmem:[%s1 + $0x18] sm:$0xf]
  %v319 = vld [vmem:[%s1 + $0x1c] sm:$0xf]
  %v320 = vld [vmem:[%s1 + $0x20] sm:$0xf]
  %v321 = vld [vmem:[%s1 + $0x24] sm:$0xf]
  %v322 = vld [vmem:[%s1 + $0x28] sm:$0xf]
  %v323 = vld [vmem:[%s1 + $0x2c] sm:$0xf]
  %v324 = vld [vmem:[%s1 + $0x30] sm:$0xf]
  %v325 = vld [vmem:[%s1 + $0x34] sm:$0xf]
  %v326 = vld [vmem:[%s1 + $0x38] sm:$0xf]
  %v327 = vld [vmem:[%s1 + $0x3c] sm:$0xf]
  %v344 = vunpack.c.l.b16 %v312
  %v345 = vunpack.c.l.b16 %v313
  %v346 = vunpack.c.l.b16 %v314
  %v347 = vunpack.c.l.b16 %v315
  %v348 = vunpack.c.l.b16 %v316
  %v349 = vunpack.c.l.b16 %v317
  %v350 = vunpack.c.l.b16 %v318
  %v351 = vunpack.c.l.b16 %v319
  %v352 = vunpack.c.l.b16 %v320
  %v353 = vunpack.c.l.b16 %v321
  %v354 = vunpack.c.l.b16 %v322
  %v355 = vunpack.c.l.b16 %v323
  %v356 = vunpack.c.l.b16 %v324
  %v357 = vunpack.c.l.b16 %v325
  %v358 = vunpack.c.l.b16 %v326
  %v359 = vunpack.c.l.b16 %v327
  %v360 = vpack.c.b16 %v345, %v344
  %v361 = vpack.c.b16 %v347, %v346
  %v362 = vpack.c.b16 %v349, %v348
  %v363 = vpack.c.b16 %v351, %v350
  %v364 = vpack.c.b16 %v353, %v352
  %v365 = vpack.c.b16 %v355, %v354
  %v366 = vpack.c.b16 %v357, %v356
  %v367 = vpack.c.b16 %v359, %v358
  %376 = vmatpush.bf16.msra.mxu0 %v206
  %377 = vmatpush.bf16.msra.mxu0 %v205
  %378 = vmatpush.bf16.msra.mxu0 %v204
  %379 = vmatpush.bf16.msra.mxu0 %v203
  %380 = vmatpush.bf16.msra.mxu0 %v202
  %381 = vmatpush.bf16.msra.mxu0 %v201
  %382 = vmatpush.bf16.msra.mxu0 %v200
  %383 = vmatpush.bf16.msra.mxu0 %v199
  %384 = vmatmul.bf16.gmra.mxu0 %v360
  %v385 = vpop.f32.mrf.mxu0
  %v386 = vadd.f32 0.0, %v385
  %v387 = vpop.f32.mrf.mxu0
  %v388 = vadd.f32 0.0, %v387
  %389 = vmatmul.bf16.gmra.mxu0 %v361
  %v390 = vpop.f32.mrf.mxu0
  %v391 = vadd.f32 0.0, %v390
  %v392 = vpop.f32.mrf.mxu0
  %v393 = vadd.f32 0.0, %v392
  %394 = vmatmul.bf16.gmra.mxu0 %v362
  %v395 = vpop.f32.mrf.mxu0
  %v396 = vadd.f32 0.0, %v395
  %v397 = vpop.f32.mrf.mxu0
  %v398 = vadd.f32 0.0, %v397
  %399 = vmatmul.bf16.gmra.mxu0 %v363
  %v400 = vpop.f32.mrf.mxu0
  %v401 = vadd.f32 0.0, %v400
  %v402 = vpop.f32.mrf.mxu0
  %v403 = vadd.f32 0.0, %v402
  %404 = vmatmul.bf16.gmra.mxu0 %v364
  %v405 = vpop.f32.mrf.mxu0
  %v406 = vadd.f32 0.0, %v405
  %v407 = vpop.f32.mrf.mxu0
  %v408 = vadd.f32 0.0, %v407
  %409 = vmatmul.bf16.gmra.mxu0 %v365
  %v410 = vpop.f32.mrf.mxu0
  %v411 = vadd.f32 0.0, %v410
  %v412 = vpop.f32.mrf.mxu0
  %v413 = vadd.f32 0.0, %v412
  %414 = vmatmul.bf16.gmra.mxu0 %v366
  %v415 = vpop.f32.mrf.mxu0
  %v416 = vadd.f32 0.0, %v415
  %v417 = vpop.f32.mrf.mxu0
  %v418 = vadd.f32 0.0, %v417
  %419 = vmatmul.bf16.gmra.mxu0 %v367
  %v420 = vpop.f32.mrf.mxu0
  %v421 = vadd.f32 0.0, %v420
  %v422 = vpop.f32.mrf.mxu0
  %v423 = vadd.f32 0.0, %v422
  %424 = vdwg.mxu0
  %v425 = vadd.f32 %v296, %v386
  %v426 = vadd.f32 %v297, %v388
  %v427 = vadd.f32 %v298, %v391
  %v428 = vadd.f32 %v299, %v393
  %v429 = vadd.f32 %v300, %v396
  %v430 = vadd.f32 %v301, %v398
  %v431 = vadd.f32 %v302, %v401
  %v432 = vadd.f32 %v303, %v403
  %v433 = vadd.f32 %v304, %v406
  %v434 = vadd.f32 %v305, %v408
  %v435 = vadd.f32 %v306, %v411
  %v436 = vadd.f32 %v307, %v413
  %v437 = vadd.f32 %v308, %v416
  %v438 = vadd.f32 %v309, %v418
  %v439 = vadd.f32 %v310, %v421
  %v440 = vadd.f32 %v311, %v423
  %441 = vst [vmem:[#allocation3] sm:$0xff] %v425
  %442 = vst [vmem:[#allocation3 + $0x8] sm:$0xff] %v426
  %443 = vst [vmem:[#allocation3 + $0x10] sm:$0xff] %v427
  %444 = vst [vmem:[#allocation3 + $0x18] sm:$0xff] %v428
  %445 = vst [vmem:[#allocation3 + $0x20] sm:$0xff] %v429
  %446 = vst [vmem:[#allocation3 + $0x28] sm:$0xff] %v430
  %447 = vst [vmem:[#allocation3 + $0x30] sm:$0xff] %v431
  %448 = vst [vmem:[#allocation3 + $0x38] sm:$0xff] %v432
  %449 = vst [vmem:[#allocation3 + $0x40] sm:$0xff] %v433
  %450 = vst [vmem:[#allocation3 + $0x48] sm:$0xff] %v434
  %451 = vst [vmem:[#allocation3 + $0x50] sm:$0xff] %v435
  %452 = vst [vmem:[#allocation3 + $0x58] sm:$0xff] %v436
  %453 = vst [vmem:[#allocation3 + $0x60] sm:$0xff] %v437
  %454 = vst [vmem:[#allocation3 + $0x68] sm:$0xff] %v438
  %455 = vst [vmem:[#allocation3 + $0x70] sm:$0xff] %v439
  %456 = vst [vmem:[#allocation3 + $0x78] sm:$0xff] %v440
  // Predicated region
  $region46: #{gnn_layer.1} parent=0 // pred_check
    %p457 = pneg %p35
  $region47: #{gnn_layer.1} parent=0 // pred_check_branch
    %459 = sbr.rel (%p457) target = $region49
  $region48: #{gnn_layer.1} parent=0 // pred_region
    %v460 = vld [vmem:[%s3] sm:$0xf]
    %v461 = vld [vmem:[%s3 + $0x4] sm:$0xf]
    %v462 = vld [vmem:[%s3 + $0x8] sm:$0xf]
    %v463 = vld [vmem:[%s3 + $0xc] sm:$0xf]
    %v464 = vld [vmem:[%s3 + $0x10] sm:$0xf]
    %v465 = vld [vmem:[%s3 + $0x14] sm:$0xf]
    %v466 = vld [vmem:[%s3 + $0x18] sm:$0xf]
    %v467 = vld [vmem:[%s3 + $0x1c] sm:$0xf]
    %v468 = vld [vmem:[%s3 + $0x20] sm:$0xf]
    %v469 = vld [vmem:[%s3 + $0x24] sm:$0xf]
    %v470 = vld [vmem:[%s3 + $0x28] sm:$0xf]
    %v471 = vld [vmem:[%s3 + $0x2c] sm:$0xf]
    %v472 = vld [vmem:[%s3 + $0x30] sm:$0xf]
    %v473 = vld [vmem:[%s3 + $0x34] sm:$0xf]
    %v474 = vld [vmem:[%s3 + $0x38] sm:$0xf]
    %v475 = vld [vmem:[%s3 + $0x3c] sm:$0xf]
    %v476 = vld [vmem:[#allocation2] sm:$0xff]
    %v477 = vld [vmem:[#allocation2 + $0x8] sm:$0xff]
    %v478 = vld [vmem:[#allocation2 + $0x10] sm:$0xff]
    %v479 = vld [vmem:[#allocation2 + $0x18] sm:$0xff]
    %v480 = vld [vmem:[#allocation2 + $0x20] sm:$0xff]
    %v481 = vld [vmem:[#allocation2 + $0x28] sm:$0xff]
    %v482 = vld [vmem:[#allocation2 + $0x30] sm:$0xff]
    %v483 = vld [vmem:[#allocation2 + $0x38] sm:$0xff]
    %v484 = vld [vmem:[#allocation2 + $0x40] sm:$0xff]
    %v485 = vld [vmem:[#allocation2 + $0x48] sm:$0xff]
    %v486 = vld [vmem:[#allocation2 + $0x50] sm:$0xff]
    %v487 = vld [vmem:[#allocation2 + $0x58] sm:$0xff]
    %v488 = vld [vmem:[#allocation2 + $0x60] sm:$0xff]
    %v489 = vld [vmem:[#allocation2 + $0x68] sm:$0xff]
    %v490 = vld [vmem:[#allocation2 + $0x70] sm:$0xff]
    %v491 = vld [vmem:[#allocation2 + $0x78] sm:$0xff]
    %v492 = vpack.c.bf16 %v477, %v476
    %v493 = vpack.c.bf16 %v479, %v478
    %v494 = vpack.c.bf16 %v481, %v480
    %v495 = vpack.c.bf16 %v483, %v482
    %v496 = vpack.c.bf16 %v485, %v484
    %v497 = vpack.c.bf16 %v487, %v486
    %v498 = vpack.c.bf16 %v489, %v488
    %v499 = vpack.c.bf16 %v491, %v490
    %v500 = vld [vmem:[#allocation3] sm:$0xff]
    %v501 = vld [vmem:[#allocation3 + $0x8] sm:$0xff]
    %v502 = vld [vmem:[#allocation3 + $0x10] sm:$0xff]
    %v503 = vld [vmem:[#allocation3 + $0x18] sm:$0xff]
    %v504 = vld [vmem:[#allocation3 + $0x20] sm:$0xff]
    %v505 = vld [vmem:[#allocation3 + $0x28] sm:$0xff]
    %v506 = vld [vmem:[#allocation3 + $0x30] sm:$0xff]
    %v507 = vld [vmem:[#allocation3 + $0x38] sm:$0xff]
    %v508 = vld [vmem:[#allocation3 + $0x40] sm:$0xff]
    %v509 = vld [vmem:[#allocation3 + $0x48] sm:$0xff]
    %v510 = vld [vmem:[#allocation3 + $0x50] sm:$0xff]
    %v511 = vld [vmem:[#allocation3 + $0x58] sm:$0xff]
    %v512 = vld [vmem:[#allocation3 + $0x60] sm:$0xff]
    %v513 = vld [vmem:[#allocation3 + $0x68] sm:$0xff]
    %v514 = vld [vmem:[#allocation3 + $0x70] sm:$0xff]
    %v515 = vld [vmem:[#allocation3 + $0x78] sm:$0xff]
    %v516 = vpack.c.bf16 %v501, %v500
    %v517 = vpack.c.bf16 %v503, %v502
    %v518 = vpack.c.bf16 %v505, %v504
    %v519 = vpack.c.bf16 %v507, %v506
    %v520 = vpack.c.bf16 %v509, %v508
    %v521 = vpack.c.bf16 %v511, %v510
    %v522 = vpack.c.bf16 %v513, %v512
    %v523 = vpack.c.bf16 %v515, %v514
    %v524 = vld [vmem:[%s4] sm:$0xf]
    %v525 = vld [vmem:[%s4 + $0x4] sm:$0xf]
    %v526 = vld [vmem:[%s4 + $0x8] sm:$0xf]
    %v527 = vld [vmem:[%s4 + $0xc] sm:$0xf]
    %v528 = vld [vmem:[%s4 + $0x10] sm:$0xf]
    %v529 = vld [vmem:[%s4 + $0x14] sm:$0xf]
    %v530 = vld [vmem:[%s4 + $0x18] sm:$0xf]
    %v531 = vld [vmem:[%s4 + $0x1c] sm:$0xf]
    %v532 = vld [vmem:[%s4 + $0x20] sm:$0xf]
    %v533 = vld [vmem:[%s4 + $0x24] sm:$0xf]
    %v534 = vld [vmem:[%s4 + $0x28] sm:$0xf]
    %v535 = vld [vmem:[%s4 + $0x2c] sm:$0xf]
    %v536 = vld [vmem:[%s4 + $0x30] sm:$0xf]
    %v537 = vld [vmem:[%s4 + $0x34] sm:$0xf]
    %v538 = vld [vmem:[%s4 + $0x38] sm:$0xf]
    %v539 = vld [vmem:[%s4 + $0x3c] sm:$0xf]
    %v540 = vld [vmem:[%s5] sm:$0xf]
    %v541 = vld [vmem:[%s5 + $0x4] sm:$0xf]
    %v542 = vld [vmem:[%s5 + $0x8] sm:$0xf]
    %v543 = vld [vmem:[%s5 + $0xc] sm:$0xf]
    %v544 = vld [vmem:[%s5 + $0x10] sm:$0xf]
    %v545 = vld [vmem:[%s5 + $0x14] sm:$0xf]
    %v546 = vld [vmem:[%s5 + $0x18] sm:$0xf]
    %v547 = vld [vmem:[%s5 + $0x1c] sm:$0xf]
    %v548 = vld [vmem:[%s5 + $0x20] sm:$0xf]
    %v549 = vld [vmem:[%s5 + $0x24] sm:$0xf]
    %v550 = vld [vmem:[%s5 + $0x28] sm:$0xf]
    %v551 = vld [vmem:[%s5 + $0x2c] sm:$0xf]
    %v552 = vld [vmem:[%s5 + $0x30] sm:$0xf]
    %v553 = vld [vmem:[%s5 + $0x34] sm:$0xf]
    %v554 = vld [vmem:[%s5 + $0x38] sm:$0xf]
    %v555 = vld [vmem:[%s5 + $0x3c] sm:$0xf]
    %v572 = vunpack.c.l.b16 %v540
    %v573 = vunpack.c.l.b16 %v541
    %v574 = vunpack.c.l.b16 %v542
    %v575 = vunpack.c.l.b16 %v543
    %v576 = vunpack.c.l.b16 %v544
    %v577 = vunpack.c.l.b16 %v545
    %v578 = vunpack.c.l.b16 %v546
    %v579 = vunpack.c.l.b16 %v547
    %v580 = vunpack.c.l.b16 %v548
    %v581 = vunpack.c.l.b16 %v549
    %v582 = vunpack.c.l.b16 %v550
    %v583 = vunpack.c.l.b16 %v551
    %v584 = vunpack.c.l.b16 %v552
    %v585 = vunpack.c.l.b16 %v553
    %v586 = vunpack.c.l.b16 %v554
    %v587 = vunpack.c.l.b16 %v555
    %v588 = vpack.c.b16 %v573, %v572
    %v589 = vpack.c.b16 %v575, %v574
    %v590 = vpack.c.b16 %v577, %v576
    %v591 = vpack.c.b16 %v579, %v578
    %v592 = vpack.c.b16 %v581, %v580
    %v593 = vpack.c.b16 %v583, %v582
    %v594 = vpack.c.b16 %v585, %v584
    %v595 = vpack.c.b16 %v587, %v586
    %604 = vmatpush.bf16.msra.mxu0 %v595
    %605 = vmatpush.bf16.msra.mxu0 %v594
    %606 = vmatpush.bf16.msra.mxu0 %v593
    %607 = vmatpush.bf16.msra.mxu0 %v592
    %608 = vmatpush.bf16.msra.mxu0 %v591
    %609 = vmatpush.bf16.msra.mxu0 %v590
    %610 = vmatpush.bf16.msra.mxu0 %v589
    %611 = vmatpush.bf16.msra.mxu0 %v588
    %612 = vmatmul.bf16.gmra.mxu0 %v492
    %v613 = vpop.f32.mrf.mxu0
    %v614 = vadd.f32 0.0, %v613
    %v615 = vpop.f32.mrf.mxu0
    %v616 = vadd.f32 0.0, %v615
    %617 = vmatmul.bf16.gmra.mxu0 %v493
    %v618 = vpop.f32.mrf.mxu0
    %v619 = vadd.f32 0.0, %v618
    %v620 = vpop.f32.mrf.mxu0
    %v621 = vadd.f32 0.0, %v620
    %622 = vmatmul.bf16.gmra.mxu0 %v494
    %v623 = vpop.f32.mrf.mxu0
    %v624 = vadd.f32 0.0, %v623
    %v625 = vpop.f32.mrf.mxu0
    %v626 = vadd.f32 0.0, %v625
    %627 = vmatmul.bf16.gmra.mxu0 %v495
    %v628 = vpop.f32.mrf.mxu0
    %v629 = vadd.f32 0.0, %v628
    %v630 = vpop.f32.mrf.mxu0
    %v631 = vadd.f32 0.0, %v630
    %632 = vmatmul.bf16.gmra.mxu0 %v496
    %v633 = vpop.f32.mrf.mxu0
    %v634 = vadd.f32 0.0, %v633
    %v635 = vpop.f32.mrf.mxu0
    %v636 = vadd.f32 0.0, %v635
    %637 = vmatmul.bf16.gmra.mxu0 %v497
    %v638 = vpop.f32.mrf.mxu0
    %v639 = vadd.f32 0.0, %v638
    %v640 = vpop.f32.mrf.mxu0
    %v641 = vadd.f32 0.0, %v640
    %642 = vmatmul.bf16.gmra.mxu0 %v498
    %v643 = vpop.f32.mrf.mxu0
    %v644 = vadd.f32 0.0, %v643
    %v645 = vpop.f32.mrf.mxu0
    %v646 = vadd.f32 0.0, %v645
    %647 = vmatmul.bf16.gmra.mxu0 %v499
    %v648 = vpop.f32.mrf.mxu0
    %v649 = vadd.f32 0.0, %v648
    %v650 = vpop.f32.mrf.mxu0
    %v651 = vadd.f32 0.0, %v650
    %652 = vdwg.mxu0
    %v669 = vunpack.c.l.b16 %v460
    %v670 = vunpack.c.l.b16 %v461
    %v671 = vunpack.c.l.b16 %v462
    %v672 = vunpack.c.l.b16 %v463
    %v673 = vunpack.c.l.b16 %v464
    %v674 = vunpack.c.l.b16 %v465
    %v675 = vunpack.c.l.b16 %v466
    %v676 = vunpack.c.l.b16 %v467
    %v677 = vunpack.c.l.b16 %v468
    %v678 = vunpack.c.l.b16 %v469
    %v679 = vunpack.c.l.b16 %v470
    %v680 = vunpack.c.l.b16 %v471
    %v681 = vunpack.c.l.b16 %v472
    %v682 = vunpack.c.l.b16 %v473
    %v683 = vunpack.c.l.b16 %v474
    %v684 = vunpack.c.l.b16 %v475
    %v685 = vpack.c.b16 %v670, %v669
    %v686 = vpack.c.b16 %v672, %v671
    %v687 = vpack.c.b16 %v674, %v673
    %v688 = vpack.c.b16 %v676, %v675
    %v689 = vpack.c.b16 %v678, %v677
    %v690 = vpack.c.b16 %v680, %v679
    %v691 = vpack.c.b16 %v682, %v681
    %v692 = vpack.c.b16 %v684, %v683
    %v717 = vunpack.c.l.b16 %v524
    %v718 = vunpack.c.l.b16 %v525
    %v719 = vunpack.c.l.b16 %v526
    %v720 = vunpack.c.l.b16 %v527
    %v721 = vunpack.c.l.b16 %v528
    %v722 = vunpack.c.l.b16 %v529
    %v723 = vunpack.c.l.b16 %v530
    %v724 = vunpack.c.l.b16 %v531
    %v725 = vunpack.c.l.b16 %v532
    %v726 = vunpack.c.l.b16 %v533
    %v727 = vunpack.c.l.b16 %v534
    %v728 = vunpack.c.l.b16 %v535
    %v729 = vunpack.c.l.b16 %v536
    %v730 = vunpack.c.l.b16 %v537
    %v731 = vunpack.c.l.b16 %v538
    %v732 = vunpack.c.l.b16 %v539
    %v733 = vpack.c.b16 %v718, %v717
    %v734 = vpack.c.b16 %v720, %v719
    %v735 = vpack.c.b16 %v722, %v721
    %v736 = vpack.c.b16 %v724, %v723
    %v737 = vpack.c.b16 %v726, %v725
    %v738 = vpack.c.b16 %v728, %v727
    %v739 = vpack.c.b16 %v730, %v729
    %v740 = vpack.c.b16 %v732, %v731
    %749 = vmatpush.bf16.msra.mxu0 %v740
    %750 = vmatpush.bf16.msra.mxu0 %v739
    %751 = vmatpush.bf16.msra.mxu0 %v738
    %752 = vmatpush.bf16.msra.mxu0 %v737
    %753 = vmatpush.bf16.msra.mxu0 %v736
    %754 = vmatpush.bf16.msra.mxu0 %v735
    %755 = vmatpush.bf16.msra.mxu0 %v734
    %756 = vmatpush.bf16.msra.mxu0 %v733
    %757 = vmatmul.bf16.gmra.mxu0 %v685
    %v758 = vpop.f32.mrf.mxu0
    %v759 = vadd.f32 %v614, %v758
    %v760 = vpop.f32.mrf.mxu0
    %v761 = vadd.f32 %v616, %v760
    %762 = vmatmul.bf16.gmra.mxu0 %v686
    %v763 = vpop.f32.mrf.mxu0
    %v764 = vadd.f32 %v619, %v763
    %v765 = vpop.f32.mrf.mxu0
    %v766 = vadd.f32 %v621, %v765
    %767 = vmatmul.bf16.gmra.mxu0 %v687
    %v768 = vpop.f32.mrf.mxu0
    %v769 = vadd.f32 %v624, %v768
    %v770 = vpop.f32.mrf.mxu0
    %v771 = vadd.f32 %v626, %v770
    %772 = vmatmul.bf16.gmra.mxu0 %v688
    %v773 = vpop.f32.mrf.mxu0
    %v774 = vadd.f32 %v629, %v773
    %v775 = vpop.f32.mrf.mxu0
    %v776 = vadd.f32 %v631, %v775
    %777 = vmatmul.bf16.gmra.mxu0 %v689
    %v778 = vpop.f32.mrf.mxu0
    %v779 = vadd.f32 %v634, %v778
    %v780 = vpop.f32.mrf.mxu0
    %v781 = vadd.f32 %v636, %v780
    %782 = vmatmul.bf16.gmra.mxu0 %v690
    %v783 = vpop.f32.mrf.mxu0
    %v784 = vadd.f32 %v639, %v783
    %v785 = vpop.f32.mrf.mxu0
    %v786 = vadd.f32 %v641, %v785
    %787 = vmatmul.bf16.gmra.mxu0 %v691
    %v788 = vpop.f32.mrf.mxu0
    %v789 = vadd.f32 %v644, %v788
    %v790 = vpop.f32.mrf.mxu0
    %v791 = vadd.f32 %v646, %v790
    %792 = vmatmul.bf16.gmra.mxu0 %v692
    %v793 = vpop.f32.mrf.mxu0
    %v794 = vadd.f32 %v649, %v793
    %v795 = vpop.f32.mrf.mxu0
    %v796 = vadd.f32 %v651, %v795
    %797 = vdwg.mxu0
    %v798 = vld [vmem:[%s8] sm:$0x1]
    %v800 = vperm.slane %v798, 0
    %v802 = vadd.f32 %v759, %v800
    %v803 = vadd.f32 %v761, %v800
    %v804 = vadd.f32 %v764, %v800
    %v805 = vadd.f32 %v766, %v800
    %v806 = vadd.f32 %v769, %v800
    %v807 = vadd.f32 %v771, %v800
    %v808 = vadd.f32 %v774, %v800
    %v809 = vadd.f32 %v776, %v800
    %v810 = vadd.f32 %v779, %v800
    %v811 = vadd.f32 %v781, %v800
    %v812 = vadd.f32 %v784, %v800
    %v813 = vadd.f32 %v786, %v800
    %v814 = vadd.f32 %v789, %v800
    %v815 = vadd.f32 %v791, %v800
    %v816 = vadd.f32 %v794, %v800
    %v817 = vadd.f32 %v796, %v800
    %v818 = vld [vmem:[%s6] sm:$0xf]
    %v819 = vld [vmem:[%s6 + $0x4] sm:$0xf]
    %v820 = vld [vmem:[%s6 + $0x8] sm:$0xf]
    %v821 = vld [vmem:[%s6 + $0xc] sm:$0xf]
    %v822 = vld [vmem:[%s6 + $0x10] sm:$0xf]
    %v823 = vld [vmem:[%s6 + $0x14] sm:$0xf]
    %v824 = vld [vmem:[%s6 + $0x18] sm:$0xf]
    %v825 = vld [vmem:[%s6 + $0x1c] sm:$0xf]
    %v826 = vld [vmem:[%s6 + $0x20] sm:$0xf]
    %v827 = vld [vmem:[%s6 + $0x24] sm:$0xf]
    %v828 = vld [vmem:[%s6 + $0x28] sm:$0xf]
    %v829 = vld [vmem:[%s6 + $0x2c] sm:$0xf]
    %v830 = vld [vmem:[%s6 + $0x30] sm:$0xf]
    %v831 = vld [vmem:[%s6 + $0x34] sm:$0xf]
    %v832 = vld [vmem:[%s6 + $0x38] sm:$0xf]
    %v833 = vld [vmem:[%s6 + $0x3c] sm:$0xf]
    %v834 = vld [vmem:[%s7] sm:$0xf]
    %v835 = vld [vmem:[%s7 + $0x4] sm:$0xf]
    %v836 = vld [vmem:[%s7 + $0x8] sm:$0xf]
    %v837 = vld [vmem:[%s7 + $0xc] sm:$0xf]
    %v838 = vld [vmem:[%s7 + $0x10] sm:$0xf]
    %v839 = vld [vmem:[%s7 + $0x14] sm:$0xf]
    %v840 = vld [vmem:[%s7 + $0x18] sm:$0xf]
    %v841 = vld [vmem:[%s7 + $0x1c] sm:$0xf]
    %v842 = vld [vmem:[%s7 + $0x20] sm:$0xf]
    %v843 = vld [vmem:[%s7 + $0x24] sm:$0xf]
    %v844 = vld [vmem:[%s7 + $0x28] sm:$0xf]
    %v845 = vld [vmem:[%s7 + $0x2c] sm:$0xf]
    %v846 = vld [vmem:[%s7 + $0x30] sm:$0xf]
    %v847 = vld [vmem:[%s7 + $0x34] sm:$0xf]
    %v848 = vld [vmem:[%s7 + $0x38] sm:$0xf]
    %v849 = vld [vmem:[%s7 + $0x3c] sm:$0xf]
    %v866 = vunpack.c.l.b16 %v834
    %v867 = vunpack.c.l.b16 %v835
    %v868 = vunpack.c.l.b16 %v836
    %v869 = vunpack.c.l.b16 %v837
    %v870 = vunpack.c.l.b16 %v838
    %v871 = vunpack.c.l.b16 %v839
    %v872 = vunpack.c.l.b16 %v840
    %v873 = vunpack.c.l.b16 %v841
    %v874 = vunpack.c.l.b16 %v842
    %v875 = vunpack.c.l.b16 %v843
    %v876 = vunpack.c.l.b16 %v844
    %v877 = vunpack.c.l.b16 %v845
    %v878 = vunpack.c.l.b16 %v846
    %v879 = vunpack.c.l.b16 %v847
    %v880 = vunpack.c.l.b16 %v848
    %v881 = vunpack.c.l.b16 %v849
    %v882 = vpack.c.b16 %v867, %v866
    %v883 = vpack.c.b16 %v869, %v868
    %v884 = vpack.c.b16 %v871, %v870
    %v885 = vpack.c.b16 %v873, %v872
    %v886 = vpack.c.b16 %v875, %v874
    %v887 = vpack.c.b16 %v877, %v876
    %v888 = vpack.c.b16 %v879, %v878
    %v889 = vpack.c.b16 %v881, %v880
    %898 = vmatpush.bf16.msra.mxu0 %v889
    %899 = vmatpush.bf16.msra.mxu0 %v888
    %900 = vmatpush.bf16.msra.mxu0 %v887
    %901 = vmatpush.bf16.msra.mxu0 %v886
    %902 = vmatpush.bf16.msra.mxu0 %v885
    %903 = vmatpush.bf16.msra.mxu0 %v884
    %904 = vmatpush.bf16.msra.mxu0 %v883
    %905 = vmatpush.bf16.msra.mxu0 %v882
    %906 = vmatmul.bf16.gmra.mxu0 %v516
    %v907 = vpop.f32.mrf.mxu0
    %v908 = vadd.f32 0.0, %v907
    %v909 = vpop.f32.mrf.mxu0
    %v910 = vadd.f32 0.0, %v909
    %911 = vmatmul.bf16.gmra.mxu0 %v517
    %v912 = vpop.f32.mrf.mxu0
    %v913 = vadd.f32 0.0, %v912
    %v914 = vpop.f32.mrf.mxu0
    %v915 = vadd.f32 0.0, %v914
    %916 = vmatmul.bf16.gmra.mxu0 %v518
    %v917 = vpop.f32.mrf.mxu0
    %v918 = vadd.f32 0.0, %v917
    %v919 = vpop.f32.mrf.mxu0
    %v920 = vadd.f32 0.0, %v919
    %921 = vmatmul.bf16.gmra.mxu0 %v519
    %v922 = vpop.f32.mrf.mxu0
    %v923 = vadd.f32 0.0, %v922
    %v924 = vpop.f32.mrf.mxu0
    %v925 = vadd.f32 0.0, %v924
    %926 = vmatmul.bf16.gmra.mxu0 %v520
    %v927 = vpop.f32.mrf.mxu0
    %v928 = vadd.f32 0.0, %v927
    %v929 = vpop.f32.mrf.mxu0
    %v930 = vadd.f32 0.0, %v929
    %931 = vmatmul.bf16.gmra.mxu0 %v521
    %v932 = vpop.f32.mrf.mxu0
    %v933 = vadd.f32 0.0, %v932
    %v934 = vpop.f32.mrf.mxu0
    %v935 = vadd.f32 0.0, %v934
    %936 = vmatmul.bf16.gmra.mxu0 %v522
    %v937 = vpop.f32.mrf.mxu0
    %v938 = vadd.f32 0.0, %v937
    %v939 = vpop.f32.mrf.mxu0
    %v940 = vadd.f32 0.0, %v939
    %941 = vmatmul.bf16.gmra.mxu0 %v523
    %v942 = vpop.f32.mrf.mxu0
    %v943 = vadd.f32 0.0, %v942
    %v944 = vpop.f32.mrf.mxu0
    %v945 = vadd.f32 0.0, %v944
    %946 = vdwg.mxu0
    %v963 = vunpack.c.l.b16 %v818
    %v964 = vunpack.c.l.b16 %v819
    %v965 = vunpack.c.l.b16 %v820
    %v966 = vunpack.c.l.b16 %v821
    %v967 = vunpack.c.l.b16 %v822
    %v968 = vunpack.c.l.b16 %v823
    %v969 = vunpack.c.l.b16 %v824
    %v970 = vunpack.c.l.b16 %v825
    %v971 = vunpack.c.l.b16 %v826
    %v972 = vunpack.c.l.b16 %v827
    %v973 = vunpack.c.l.b16 %v828
    %v974 = vunpack.c.l.b16 %v829
    %v975 = vunpack.c.l.b16 %v830
    %v976 = vunpack.c.l.b16 %v831
    %v977 = vunpack.c.l.b16 %v832
    %v978 = vunpack.c.l.b16 %v833
    %v979 = vpack.c.b16 %v964, %v963
    %v980 = vpack.c.b16 %v966, %v965
    %v981 = vpack.c.b16 %v968, %v967
    %v982 = vpack.c.b16 %v970, %v969
    %v983 = vpack.c.b16 %v972, %v971
    %v984 = vpack.c.b16 %v974, %v973
    %v985 = vpack.c.b16 %v976, %v975
    %v986 = vpack.c.b16 %v978, %v977
    %995 = vmatpush.bf16.msra.mxu0 %v986
    %996 = vmatpush.bf16.msra.mxu0 %v985
    %997 = vmatpush.bf16.msra.mxu0 %v984
    %998 = vmatpush.bf16.msra.mxu0 %v983
    %999 = vmatpush.bf16.msra.mxu0 %v982
    %1000 = vmatpush.bf16.msra.mxu0 %v981
    %1001 = vmatpush.bf16.msra.mxu0 %v980
    %1002 = vmatpush.bf16.msra.mxu0 %v979
    %1003 = vmatmul.bf16.gmra.mxu0 %v685
    %v1004 = vpop.f32.mrf.mxu0
    %v1005 = vadd.f32 %v908, %v1004
    %v1006 = vpop.f32.mrf.mxu0
    %v1007 = vadd.f32 %v910, %v1006
    %1008 = vmatmul.bf16.gmra.mxu0 %v686
    %v1009 = vpop.f32.mrf.mxu0
    %v1010 = vadd.f32 %v913, %v1009
    %v1011 = vpop.f32.mrf.mxu0
    %v1012 = vadd.f32 %v915, %v1011
    %1013 = vmatmul.bf16.gmra.mxu0 %v687
    %v1014 = vpop.f32.mrf.mxu0
    %v1015 = vadd.f32 %v918, %v1014
    %v1016 = vpop.f32.mrf.mxu0
    %v1017 = vadd.f32 %v920, %v1016
    %1018 = vmatmul.bf16.gmra.mxu0 %v688
    %v1019 = vpop.f32.mrf.mxu0
    %v1020 = vadd.f32 %v923, %v1019
    %v1021 = vpop.f32.mrf.mxu0
    %v1022 = vadd.f32 %v925, %v1021
    %1023 = vmatmul.bf16.gmra.mxu0 %v689
    %v1024 = vpop.f32.mrf.mxu0
    %v1025 = vadd.f32 %v928, %v1024
    %v1026 = vpop.f32.mrf.mxu0
    %v1027 = vadd.f32 %v930, %v1026
    %1028 = vmatmul.bf16.gmra.mxu0 %v690
    %v1029 = vpop.f32.mrf.mxu0
    %v1030 = vadd.f32 %v933, %v1029
    %v1031 = vpop.f32.mrf.mxu0
    %v1032 = vadd.f32 %v935, %v1031
    %1033 = vmatmul.bf16.gmra.mxu0 %v691
    %v1034 = vpop.f32.mrf.mxu0
    %v1035 = vadd.f32 %v938, %v1034
    %v1036 = vpop.f32.mrf.mxu0
    %v1037 = vadd.f32 %v940, %v1036
    %1038 = vmatmul.bf16.gmra.mxu0 %v692
    %v1039 = vpop.f32.mrf.mxu0
    %v1040 = vadd.f32 %v943, %v1039
    %v1041 = vpop.f32.mrf.mxu0
    %v1042 = vadd.f32 %v945, %v1041
    %1043 = vdwg.mxu0
    %v1044 = vld [vmem:[%s9] sm:$0x1]
    %v1046 = vperm.slane %v1044, 0
    %v1048 = vadd.f32 %v1005, %v1046
    %v1049 = vadd.f32 %v1007, %v1046
    %v1050 = vadd.f32 %v1010, %v1046
    %v1051 = vadd.f32 %v1012, %v1046
    %v1052 = vadd.f32 %v1015, %v1046
    %v1053 = vadd.f32 %v1017, %v1046
    %v1054 = vadd.f32 %v1020, %v1046
    %v1055 = vadd.f32 %v1022, %v1046
    %v1056 = vadd.f32 %v1025, %v1046
    %v1057 = vadd.f32 %v1027, %v1046
    %v1058 = vadd.f32 %v1030, %v1046
    %v1059 = vadd.f32 %v1032, %v1046
    %v1060 = vadd.f32 %v1035, %v1046
    %v1061 = vadd.f32 %v1037, %v1046
    %v1062 = vadd.f32 %v1040, %v1046
    %v1063 = vadd.f32 %v1042, %v1046
    %v1064 = vunpack.c.l.bf16 %v460
    %v1065 = vunpack.c.l.bf16 %v461
    %v1066 = vunpack.c.l.bf16 %v462
    %v1067 = vunpack.c.l.bf16 %v463
    %v1068 = vunpack.c.l.bf16 %v464
    %v1069 = vunpack.c.l.bf16 %v465
    %v1070 = vunpack.c.l.bf16 %v466
    %v1071 = vunpack.c.l.bf16 %v467
    %v1072 = vunpack.c.l.bf16 %v468
    %v1073 = vunpack.c.l.bf16 %v469
    %v1074 = vunpack.c.l.bf16 %v470
    %v1075 = vunpack.c.l.bf16 %v471
    %v1076 = vunpack.c.l.bf16 %v472
    %v1077 = vunpack.c.l.bf16 %v473
    %v1078 = vunpack.c.l.bf16 %v474
    %v1079 = vunpack.c.l.bf16 %v475
    %v1080 = vmax.f32 %v802, 0.0
    %v1081 = vmax.f32 %v803, 0.0
    %v1082 = vmax.f32 %v804, 0.0
    %v1083 = vmax.f32 %v805, 0.0
    %v1084 = vmax.f32 %v806, 0.0
    %v1085 = vmax.f32 %v807, 0.0
    %v1086 = vmax.f32 %v808, 0.0
    %v1087 = vmax.f32 %v809, 0.0
    %v1088 = vmax.f32 %v810, 0.0
    %v1089 = vmax.f32 %v811, 0.0
    %v1090 = vmax.f32 %v812, 0.0
    %v1091 = vmax.f32 %v813, 0.0
    %v1092 = vmax.f32 %v814, 0.0
    %v1093 = vmax.f32 %v815, 0.0
    %v1094 = vmax.f32 %v816, 0.0
    %v1095 = vmax.f32 %v817, 0.0
    %v1096 = vadd.f32 %v1064, %v1080
    %v1097 = vadd.f32 %v1065, %v1081
    %v1098 = vadd.f32 %v1066, %v1082
    %v1099 = vadd.f32 %v1067, %v1083
    %v1100 = vadd.f32 %v1068, %v1084
    %v1101 = vadd.f32 %v1069, %v1085
    %v1102 = vadd.f32 %v1070, %v1086
    %v1103 = vadd.f32 %v1071, %v1087
    %v1104 = vadd.f32 %v1072, %v1088
    %v1105 = vadd.f32 %v1073, %v1089
    %v1106 = vadd.f32 %v1074, %v1090
    %v1107 = vadd.f32 %v1075, %v1091
    %v1108 = vadd.f32 %v1076, %v1092
    %v1109 = vadd.f32 %v1077, %v1093
    %v1110 = vadd.f32 %v1078, %v1094
    %v1111 = vadd.f32 %v1079, %v1095
    %v1112 = vmax.f32 %v1048, 0.0
    %v1113 = vmax.f32 %v1049, 0.0
    %v1114 = vmax.f32 %v1050, 0.0
    %v1115 = vmax.f32 %v1051, 0.0
    %v1116 = vmax.f32 %v1052, 0.0
    %v1117 = vmax.f32 %v1053, 0.0
    %v1118 = vmax.f32 %v1054, 0.0
    %v1119 = vmax.f32 %v1055, 0.0
    %v1120 = vmax.f32 %v1056, 0.0
    %v1121 = vmax.f32 %v1057, 0.0
    %v1122 = vmax.f32 %v1058, 0.0
    %v1123 = vmax.f32 %v1059, 0.0
    %v1124 = vmax.f32 %v1060, 0.0
    %v1125 = vmax.f32 %v1061, 0.0
    %v1126 = vmax.f32 %v1062, 0.0
    %v1127 = vmax.f32 %v1063, 0.0
    %v1128 = vadd.f32 %v1096, %v1112
    %v1129 = vadd.f32 %v1097, %v1113
    %v1130 = vadd.f32 %v1098, %v1114
    %v1131 = vadd.f32 %v1099, %v1115
    %v1132 = vadd.f32 %v1100, %v1116
    %v1133 = vadd.f32 %v1101, %v1117
    %v1134 = vadd.f32 %v1102, %v1118
    %v1135 = vadd.f32 %v1103, %v1119
    %v1136 = vadd.f32 %v1104, %v1120
    %v1137 = vadd.f32 %v1105, %v1121
    %v1138 = vadd.f32 %v1106, %v1122
    %v1139 = vadd.f32 %v1107, %v1123
    %v1140 = vadd.f32 %v1108, %v1124
    %v1141 = vadd.f32 %v1109, %v1125
    %v1142 = vadd.f32 %v1110, %v1126
    %v1143 = vadd.f32 %v1111, %v1127
    %1144 = vst [vmem:[%s10] sm:$0xff] %v1128
    %1145 = vst [vmem:[%s10 + $0x8] sm:$0xff] %v1129
    %1146 = vst [vmem:[%s10 + $0x10] sm:$0xff] %v1130
    %1147 = vst [vmem:[%s10 + $0x18] sm:$0xff] %v1131
    %1148 = vst [vmem:[%s10 + $0x20] sm:$0xff] %v1132
    %1149 = vst [vmem:[%s10 + $0x28] sm:$0xff] %v1133
    %1150 = vst [vmem:[%s10 + $0x30] sm:$0xff] %v1134
    %1151 = vst [vmem:[%s10 + $0x38] sm:$0xff] %v1135
    %1152 = vst [vmem:[%s10 + $0x40] sm:$0xff] %v1136
    %1153 = vst [vmem:[%s10 + $0x48] sm:$0xff] %v1137
    %1154 = vst [vmem:[%s10 + $0x50] sm:$0xff] %v1138
    %1155 = vst [vmem:[%s10 + $0x58] sm:$0xff] %v1139
    %1156 = vst [vmem:[%s10 + $0x60] sm:$0xff] %v1140
    %1157 = vst [vmem:[%s10 + $0x68] sm:$0xff] %v1141
    %1158 = vst [vmem:[%s10 + $0x70] sm:$0xff] %v1142
    %1159 = vst [vmem:[%s10 + $0x78] sm:$0xff] %v1143
  $region49: #{gnn_layer.1} parent=0 // pred_fallthru
    _
  // Predicated region
  $region50: #{gnn_layer.1} parent=0 // pred_check
    _
  $region51: #{gnn_layer.1} parent=0 // pred_check_branch
    %1161 = sbr.rel (0) target = $region53
  $region52: #{gnn_layer.1} parent=0 // pred_region
    _
  $region53: #{gnn_layer.1} parent=0 // pred_fallthru
    _
  // Predicated region
  $region54: #{gnn_layer.1} parent=0 // pred_check
    _
  $region55: #{gnn_layer.1} parent=0 // pred_check_branch
    %1163 = sbr.rel (0) target = $region57
  $region56: #{gnn_layer.1} parent=0 // pred_region
    _
  $region57: #{gnn_layer.1} parent=0 // pred_fallthru
    _

</llo_original>
